<compile_context>
chip_gen: v5e
topology: v5e:2x2
jax: 0.10.0
libtpu: 0.0.40
codegen_flags: <defaults>
</compile_context>

<pallas_src>
import functools

import jax
import jax.numpy as jnp
from jax.experimental import pallas as pl
from jax.experimental.pallas import tpu as pltpu


def _conv_rows_cos_kernel(x_ref, w_ref, b_ref, o_ref, *, stride):
    # x_ref: (1, HP, WP*C)     full padded image (row-flattened) for this batch elem
    # w_ref: (KH, WP*C, OW*O)  Toeplitz-lowered conv weight
    # b_ref: (1, OW*O)         bias tiled across OW
    # o_ref: (1, TH, OW*O)     lane-dense output row tile
    th = o_ref.shape[1]
    owo = o_ref.shape[2]
    kh_taps = w_ref.shape[0]

    row0 = pl.program_id(1) * (th * stride)   # first padded input row of this tile
    acc = jnp.zeros((th, owo), jnp.float32)
    for kh in range(kh_taps):                 # static unroll, KH is small
        if stride == 1:
            a = x_ref[0, pl.ds(row0 + kh, th), :]
        else:
            a = x_ref[0, pl.ds(row0 + kh, th, stride=stride), :]
        acc += jnp.dot(a, w_ref[kh], preferred_element_type=jnp.float32)

    o_ref[0] = jnp.cos(acc + b_ref[...]).astype(o_ref.dtype)


@functools.partial(
    jax.jit, static_argnames=("stride", "padding", "th", "compute_dtype"))
def random_cos_forward(x_nchw, weight, bias, *, stride=1, padding=0, th=64,
                       compute_dtype=jnp.float32):
    """cos(conv2d(x, weight, bias, stride, padding)) via a Pallas TPU kernel.

    x_nchw: (N, C, H, W) f32, weight: (O, C, KH, KW) f32 (PyTorch layout),
    bias: (O,) f32.  Returns (N, O, OH, OW) f32.
    """
    n, c, h, w = x_nchw.shape
    o, c_w, kh, kw = weight.shape
    assert c == c_w
    hp, wp = h + 2 * padding, w + 2 * padding
    oh = (hp - kh) // stride + 1
    ow = (wp - kw) // stride + 1

    # ---- wrapper glue (plain JAX): layout, zero-pad, row-flatten --------------
    # NCHW output layout is part of the module spec; if the consumer took NHWC
    # the two transposes here could be dropped.
    x_nhwc = jnp.transpose(x_nchw, (0, 2, 3, 1))
    x_pad = jnp.pad(
        x_nhwc, ((0, 0), (padding, padding), (padding, padding), (0, 0)))
    x_rows = x_pad.reshape(n, hp, wp * c).astype(compute_dtype)

    # ---- Toeplitz-lowered weight: conv == KH row-matmuls, lane-dense output ---
    # wt[kh, iw*C + c, ow*O + o] = weight[o, c, kh, iw - ow*stride] within taps.
    w_k = jnp.transpose(weight, (2, 3, 1, 0))                       # (KH, KW, C, O)
    sel = (jnp.arange(wp)[None, :, None]
           == jnp.arange(ow)[None, None, :] * stride
           + jnp.arange(kw)[:, None, None]).astype(weight.dtype)    # (KW, WP, OW)
    wt = jnp.einsum("xiw,kxco->kicwo", sel, w_k)                    # (KH, WP, C, OW, O)
    wt = wt.reshape(kh, wp * c, ow * o).astype(compute_dtype)
    b_big = jnp.tile(bias, ow).reshape(1, ow * o).astype(jnp.float32)

    # ---- row tile: multiple of 8 dividing OH (fall back to full OH) -----------
    th_eff = next((d for d in range(min(th, oh), 0, -1)
                   if oh % d == 0 and d % 8 == 0), oh)
    grid = (n, oh // th_eff)

    itemsize = jnp.dtype(compute_dtype).itemsize
    cost = pl.CostEstimate(
        flops=2 * n * oh * kh * (wp * c) * (ow * o),
        transcendentals=n * oh * ow * o,
        bytes_accessed=(n * hp * wp * c * itemsize          # activations
                        + kh * wp * c * ow * o * itemsize   # lowered weight
                        + ow * o * 4                        # bias
                        + n * oh * ow * o * 4))             # output

    out_rows = pl.pallas_call(
        functools.partial(_conv_rows_cos_kernel, stride=stride),
        out_shape=jax.ShapeDtypeStruct((n, oh, ow * o), jnp.float32),
        grid=grid,
        in_specs=[
            # whole padded image of batch elem b; block index constant over t,
            # so it is DMA'd once per batch element and reused across row tiles.
            pl.BlockSpec((1, hp, wp * c), lambda b, t: (b, 0, 0)),
            pl.BlockSpec((kh, wp * c, ow * o), lambda b, t: (0, 0, 0)),
            pl.BlockSpec((1, ow * o), lambda b, t: (0, 0)),
        ],
        out_specs=pl.BlockSpec((1, th_eff, ow * o), lambda b, t: (b, t, 0)),
        compiler_params=pltpu.CompilerParams(
            dimension_semantics=("parallel", "parallel")),
        cost_estimate=cost,
    )(x_rows, wt, b_big)

    # (N, OH, OW*O) -> (N, OH, OW, O) -> NCHW
    return jnp.transpose(out_rows.reshape(n, oh, ow, o), (0, 3, 1, 2))


def _reference(x_nchw, weight, bias, stride, padding):
    y = jax.lax.conv_general_dilated(
        x_nchw, weight,
        window_strides=(stride, stride),
        padding=[(padding, padding), (padding, padding)],
        dimension_numbers=("NCHW", "OIHW", "NCHW"))
    return jnp.cos(y + bias[None, :, None, None])


if __name__ == "__main__":
    # Module-equivalent config: Conv2d(in=4, out=8, kernel=3), stride=1, padding=1.
    N, C, H, W = 2, 4, 16, 16
    O, KH, KW = 8, 3, 3
    stride, padding = 1, 1

    key = jax.random.PRNGKey(0)
    kx, kw_, kb = jax.random.split(key, 3)
    x = jax.random.normal(kx, (N, C, H, W), dtype=jnp.float32)
    fan_in = C * KH * KW
    bound = 1.0 / (fan_in ** 0.5)
    weight = jax.random.uniform(kw_, (O, C, KH, KW), jnp.float32, -bound, bound)
    bias = jax.random.uniform(kb, (O,), jnp.float32, -bound, bound)

    ref = _reference(x, weight, bias, stride, padding)

    out = random_cos_forward(x, weight, bias, stride=stride, padding=padding)
    out = jax.block_until_ready(out)
    assert out.shape == (N, O, H, W), out.shape
    assert jnp.allclose(out, ref, atol=1e-4, rtol=1e-4), \
        float(jnp.max(jnp.abs(out - ref)))

    print("KERNEL_OK")
</pallas_src>

<mosaic_0001>
module attributes {stable_mosaic.version = 11 : i64} {
  func.func @_conv_rows_cos_kernel(%arg0: i32, %arg1: i32, %arg2: memref<1x18x72xf32, #tpu.memory_space<vmem>>, %arg3: memref<3x72x128xf32, #tpu.memory_space<vmem>>, %arg4: memref<1x128xf32, #tpu.memory_space<vmem>>, %arg5: memref<1x16x128xf32, #tpu.memory_space<vmem>>) attributes {dimension_semantics = [#tpu.dimension_semantics<parallel>, #tpu.dimension_semantics<parallel>], iteration_bounds = array<i64: 2, 1>, scalar_prefetch = 0 : i64, scratch_operands = 0 : i64, tpu.core_type = #tpu.core_type<tc>, window_params = [{transform_indices = @transform_0, window_bounds = array<i64: 1, 18, 72>}, {pipeline_mode = #tpu.pipeline_mode<synchronous>, transform_indices = @transform_1, window_bounds = array<i64: 3, 72, 128>}, {pipeline_mode = #tpu.pipeline_mode<synchronous>, transform_indices = @transform_2, window_bounds = array<i64: 1, 128>}, {transform_indices = @transform_3, window_bounds = array<i64: 1, 16, 128>}]} {
    %c16_i32 = arith.constant 16 : i32
    %0 = arith.muli %arg1, %c16_i32 : i32
    %cst = arith.constant 0.000000e+00 : f32
    %1 = vector.broadcast %cst : f32 to vector<16x128xf32>
    %c0_i32 = arith.constant 0 : i32
    %2 = arith.addi %0, %c0_i32 : i32
    %c0 = arith.constant 0 : index
    %3 = arith.index_cast %2 : i32 to index
    %c0_0 = arith.constant 0 : index
    %4 = vector.load %arg2[%c0, %3, %c0_0] : memref<1x18x72xf32, #tpu.memory_space<vmem>>, vector<1x16x72xf32>
    %5 = vector.shape_cast %4 : vector<1x16x72xf32> to vector<16x72xf32>
    %c0_1 = arith.constant 0 : index
    %c0_2 = arith.constant 0 : index
    %c0_3 = arith.constant 0 : index
    %6 = vector.load %arg3[%c0_1, %c0_2, %c0_3] : memref<3x72x128xf32, #tpu.memory_space<vmem>>, vector<1x72x128xf32>
    %7 = vector.shape_cast %6 : vector<1x72x128xf32> to vector<72x128xf32>
    %cst_4 = arith.constant dense<0.000000e+00> : vector<16x128xf32>
    %8 = tpu.matmul %5, %7, %cst_4 {dimension_numbers = #tpu.dot_dimension_numbers<[1], [0], [0], [1], [0, 0, 1, 1], [], []>} : vector<16x72xf32>, vector<72x128xf32>, vector<16x128xf32> -> vector<16x128xf32>
    %9 = arith.addf %1, %8 : vector<16x128xf32>
    %c1_i32 = arith.constant 1 : i32
    %10 = arith.addi %0, %c1_i32 : i32
    %c0_5 = arith.constant 0 : index
    %11 = arith.index_cast %10 : i32 to index
    %c0_6 = arith.constant 0 : index
    %12 = vector.load %arg2[%c0_5, %11, %c0_6] : memref<1x18x72xf32, #tpu.memory_space<vmem>>, vector<1x16x72xf32>
    %13 = vector.shape_cast %12 : vector<1x16x72xf32> to vector<16x72xf32>
    %c1 = arith.constant 1 : index
    %c0_7 = arith.constant 0 : index
    %c0_8 = arith.constant 0 : index
    %14 = vector.load %arg3[%c1, %c0_7, %c0_8] : memref<3x72x128xf32, #tpu.memory_space<vmem>>, vector<1x72x128xf32>
    %15 = vector.shape_cast %14 : vector<1x72x128xf32> to vector<72x128xf32>
    %cst_9 = arith.constant dense<0.000000e+00> : vector<16x128xf32>
    %16 = tpu.matmul %13, %15, %cst_9 {dimension_numbers = #tpu.dot_dimension_numbers<[1], [0], [0], [1], [0, 0, 1, 1], [], []>} : vector<16x72xf32>, vector<72x128xf32>, vector<16x128xf32> -> vector<16x128xf32>
    %17 = arith.addf %9, %16 : vector<16x128xf32>
    %c2_i32 = arith.constant 2 : i32
    %18 = arith.addi %0, %c2_i32 : i32
    %c0_10 = arith.constant 0 : index
    %19 = arith.index_cast %18 : i32 to index
    %c0_11 = arith.constant 0 : index
    %20 = vector.load %arg2[%c0_10, %19, %c0_11] : memref<1x18x72xf32, #tpu.memory_space<vmem>>, vector<1x16x72xf32>
    %21 = vector.shape_cast %20 : vector<1x16x72xf32> to vector<16x72xf32>
    %c2 = arith.constant 2 : index
    %c0_12 = arith.constant 0 : index
    %c0_13 = arith.constant 0 : index
    %22 = vector.load %arg3[%c2, %c0_12, %c0_13] : memref<3x72x128xf32, #tpu.memory_space<vmem>>, vector<1x72x128xf32>
    %23 = vector.shape_cast %22 : vector<1x72x128xf32> to vector<72x128xf32>
    %cst_14 = arith.constant dense<0.000000e+00> : vector<16x128xf32>
    %24 = tpu.matmul %21, %23, %cst_14 {dimension_numbers = #tpu.dot_dimension_numbers<[1], [0], [0], [1], [0, 0, 1, 1], [], []>} : vector<16x72xf32>, vector<72x128xf32>, vector<16x128xf32> -> vector<16x128xf32>
    %25 = arith.addf %17, %24 : vector<16x128xf32>
    %c0_15 = arith.constant 0 : index
    %c0_16 = arith.constant 0 : index
    %26 = vector.load %arg4[%c0_15, %c0_16] : memref<1x128xf32, #tpu.memory_space<vmem>>, vector<1x128xf32>
    %27 = vector.broadcast %26 : vector<1x128xf32> to vector<16x128xf32>
    %28 = arith.addf %25, %27 : vector<16x128xf32>
    %29 = math.cos %28 : vector<16x128xf32>
    %c0_17 = arith.constant 0 : index
    %c0_18 = arith.constant 0 : index
    %c0_19 = arith.constant 0 : index
    %30 = vector.load %arg5[%c0_17, %c0_18, %c0_19] : memref<1x16x128xf32, #tpu.memory_space<vmem>>, vector<1x16x128xf32>
    %31 = vector.shape_cast %30 : vector<1x16x128xf32> to vector<16x128xf32>
    %32 = vector.shape_cast %29 : vector<16x128xf32> to vector<1x16x128xf32>
    tpu.vector_store %arg5[%c0_17, %c0_18, %c0_19], %32 {strides = array<i32>} : memref<1x16x128xf32, #tpu.memory_space<vmem>>, vector<1x16x128xf32>,
    return
  }
  func.func @transform_0(%arg0: i32, %arg1: i32) -> (i32, i32, i32) {
    %c0_i32 = arith.constant 0 : i32
    %c0_i32_0 = arith.constant 0 : i32
    %c0_i32_1 = arith.constant 0 : i32
    return %arg0, %c0_i32, %c0_i32_0 : i32, i32, i32
  }
  func.func @transform_1(%arg0: i32, %arg1: i32) -> (i32, i32, i32) {
    %c0_i32 = arith.constant 0 : i32
    %c0_i32_0 = arith.constant 0 : i32
    %c0_i32_1 = arith.constant 0 : i32
    %c0_i32_2 = arith.constant 0 : i32
    return %c0_i32, %c0_i32_0, %c0_i32_1 : i32, i32, i32
  }
  func.func @transform_2(%arg0: i32, %arg1: i32) -> (i32, i32) {
    %c0_i32 = arith.constant 0 : i32
    %c0_i32_0 = arith.constant 0 : i32
    %c0_i32_1 = arith.constant 0 : i32
    return %c0_i32, %c0_i32_0 : i32, i32
  }
  func.func @transform_3(%arg0: i32, %arg1: i32) -> (i32, i32, i32) {
    %c0_i32 = arith.constant 0 : i32
    %c0_i32_0 = arith.constant 0 : i32
    return %arg0, %arg1, %c0_i32 : i32, i32, i32
  }
}

</mosaic_0001>

<llo_original>
// kernel: tile.8
$region0: #{tile.8}
  #allocation0 [shape = 's32[1]{0}', space=sflag, size = 0x4, scoped, tag = 'scoped memory for tile.8']
  %s0 = inlined_call_operand.vmem [shape: f32[8], index: 0, kind: input, shape index: {}]
  %s1 = inlined_call_operand.vmem [shape: f32[16,8], index: 1, kind: output, shape index: {}]
  // Predicated region
  $region2: #{tile.8} parent=0 // pred_check
    _
  $region3: #{tile.8} parent=0 // pred_check_branch
    %3 = sbr.rel (0) target = $region5
  $region4: #{tile.8} parent=0 // pred_region
    _
  $region5: #{tile.8} parent=0 // pred_fallthru
    _
  %v4 = vld [vmem:[%s0] ss:$0 sm:$0xff]
  %5 = vst [vmem:[%s1] sm:$0xff] %v4
  %s6 = scalar_lea.vmem %s1, 8
  %7 = vst [vmem:[%s6] sm:$0xff] %v4

// kernel: tile.9
$region0: #{tile.9}
  %s0 = inlined_call_operand.vmem [shape: f32[16,8], index: 0, kind: input, shape index: {}]
  %s1 = inlined_call_operand.vmem [shape: f32[1,128], index: 1, kind: output, shape index: {}]
  $region1: #{tile.9} parent=0
    #allocation0 [shape = 'u8[4096]{0}', space=vmem, size = 0x1000, scoped, tag = 'scoped mem for output reshape']
    %v2 = vld [vmem:[%s0] sm:$0x1]
    %vm3 = vcmask 64512
    %4 = vst.msk [vmem:[#allocation0] sm:$0x1] %vm3, %v2
    %s5 = scalar_lea.vmem %s0, 15
    %v6 = vld [vmem:[%s5] sm:$0x1]
    %7 = vrot.lane.b32.xlu0 %v6, 120
    %v8 = vpop.permute.xlu0 %7
    %vm9 = vcmask 1048512
    %10 = vst.msk [vmem:[#allocation0] sm:$0x1] %vm9, %v8
    %s11 = scalar_lea.vmem %s0, 14
    %v12 = vld [vmem:[%s11] sm:$0x1]
    %13 = vrot.lane.b32.xlu0 %v12, 112
    %v14 = vpop.permute.xlu0 %13
    %vm15 = vcmask 982912
    %16 = vst.msk [vmem:[#allocation0] sm:$0x1] %vm15, %v14
    %s17 = scalar_lea.vmem %s0, 13
    %v18 = vld [vmem:[%s17] sm:$0x1]
    %19 = vrot.lane.b32.xlu0 %v18, 104
    %v20 = vpop.permute.xlu0 %19
    %vm21 = vcmask 917312
    %22 = vst.msk [vmem:[#allocation0] sm:$0x1] %vm21, %v20
    %s23 = scalar_lea.vmem %s0, 12
    %v24 = vld [vmem:[%s23] sm:$0x1]
    %25 = vrot.lane.b32.xlu0 %v24, 96
    %v26 = vpop.permute.xlu0 %25
    %vm27 = vcmask 851712
    %28 = vst.msk [vmem:[#allocation0] sm:$0x1] %vm27, %v26
    %s29 = scalar_lea.vmem %s0, 11
    %v30 = vld [vmem:[%s29] sm:$0x1]
    %31 = vrot.lane.b32.xlu0 %v30, 88
    %v32 = vpop.permute.xlu0 %31
    %vm33 = vcmask 786112
    %34 = vst.msk [vmem:[#allocation0] sm:$0x1] %vm33, %v32
    %s35 = scalar_lea.vmem %s0, 10
    %v36 = vld [vmem:[%s35] sm:$0x1]
    %37 = vrot.lane.b32.xlu0 %v36, 80
    %v38 = vpop.permute.xlu0 %37
    %vm39 = vcmask 720512
    %40 = vst.msk [vmem:[#allocation0] sm:$0x1] %vm39, %v38
    %s41 = scalar_lea.vmem %s0, 9
    %v42 = vld [vmem:[%s41] sm:$0x1]
    %43 = vrot.lane.b32.xlu0 %v42, 72
    %v44 = vpop.permute.xlu0 %43
    %vm45 = vcmask 654912
    %46 = vst.msk [vmem:[#allocation0] sm:$0x1] %vm45, %v44
    %s47 = scalar_lea.vmem %s0, 8
    %v48 = vld [vmem:[%s47] sm:$0x1]
    %49 = vrot.lane.b32.xlu0 %v48, 64
    %v50 = vpop.permute.xlu0 %49
    %vm51 = vcmask 589312
    %52 = vst.msk [vmem:[#allocation0] sm:$0x1] %vm51, %v50
    %s53 = scalar_lea.vmem %s0, 7
    %v54 = vld [vmem:[%s53] sm:$0x1]
    %55 = vrot.lane.b32.xlu0 %v54, 56
    %v56 = vpop.permute.xlu0 %55
    %vm57 = vcmask 523712
    %58 = vst.msk [vmem:[#allocation0] sm:$0x1] %vm57, %v56
    %s59 = scalar_lea.vmem %s0, 6
    %v60 = vld [vmem:[%s59] sm:$0x1]
    %61 = vrot.lane.b32.xlu0 %v60, 48
    %v62 = vpop.permute.xlu0 %61
    %vm63 = vcmask 458112
    %64 = vst.msk [vmem:[#allocation0] sm:$0x1] %vm63, %v62
    %s65 = scalar_lea.vmem %s0, 5
    %v66 = vld [vmem:[%s65] sm:$0x1]
    %67 = vrot.lane.b32.xlu0 %v66, 40
    %v68 = vpop.permute.xlu0 %67
    %vm69 = vcmask 392512
    %70 = vst.msk [vmem:[#allocation0] sm:$0x1] %vm69, %v68
    %s71 = scalar_lea.vmem %s0, 4
    %v72 = vld [vmem:[%s71] sm:$0x1]
    %73 = vrot.lane.b32.xlu0 %v72, 32
    %v74 = vpop.permute.xlu0 %73
    %vm75 = vcmask 326912
    %76 = vst.msk [vmem:[#allocation0] sm:$0x1] %vm75, %v74
    %s77 = scalar_lea.vmem %s0, 3
    %v78 = vld [vmem:[%s77] sm:$0x1]
    %79 = vrot.lane.b32.xlu0 %v78, 24
    %v80 = vpop.permute.xlu0 %79
    %vm81 = vcmask 261312
    %82 = vst.msk [vmem:[#allocation0] sm:$0x1] %vm81, %v80
    %s83 = scalar_lea.vmem %s0, 2
    %v84 = vld [vmem:[%s83] sm:$0x1]
    %85 = vrot.lane.b32.xlu0 %v84, 16
    %v86 = vpop.permute.xlu0 %85
    %vm87 = vcmask 195712
    %88 = vst.msk [vmem:[#allocation0] sm:$0x1] %vm87, %v86
    %s89 = scalar_lea.vmem %s0, 1
    %v90 = vld [vmem:[%s89] sm:$0x1]
    %91 = vrot.lane.b32.xlu0 %v90, 8
    %v92 = vpop.permute.xlu0 %91
    %vm93 = vcmask 130112
    %94 = vst.msk [vmem:[#allocation0] sm:$0x1] %vm93, %v92
    %s96 = ssub.s32 2, 1
    %v97 = vld [vmem:[#allocation0] sm:%s96]
    %s99 = ssub.s32 2, 1
    %100 = vst [vmem:[%s1] sm:%s99] %v97

// kernel: random_cos_forward.1
$region0: #{random_cos_forward.1}
  #allocation0 [shape = 'u32[]', space=smem, size = 0x4, offset = 0x4, fixed_abs, tag = 'smem constant byte address 0x4 - core index']
  #allocation1 [shape = 'u32[72,128]{1,0:T(1,128)}', space=vmem, size = 0x9000, scoped, tag = 'internal scratch']
  %s0 = inlined_call_operand.vmem [shape: f32[2,18,72], index: 0, kind: input, shape index: {}]
  %s1 = inlined_call_operand.vmem [shape: f32[3,72,128], index: 1, kind: input, shape index: {}]
  %s2 = inlined_call_operand.vmem [shape: f32[1,128], index: 2, kind: input, shape index: {}]
  %s3 = inlined_call_operand.vmem [shape: f32[2,16,128], index: 3, kind: output, shape index: {}]
  %s4 = sld [smem:[#allocation0]]
  $region45: #{random_cos_forward.1} parent=0
    _
  %s6 = ssub.s32 1, %s4
  %s7 = scalar_select 0, %s6, %s4
  loop: start=0, step=1, limit=4
  $region2: #{random_cos_forward.1} parent=0 // loop_pre_header
    _
  $region3: #{random_cos_forward.1} parent=0 // loop_header
    %s9 = sphi 0, %s13
    %p10 = scmp.ge.s32.totalorder %s9, 4
    %s16 = sphi 0, %s28
    %s17 = sphi 0, %s24
    %s18 = sphi 0, %s16
    %s19 = sphi 0, %s17
    %s20 = sphi 0, %s18
    %s21 = sphi 0, %s19
    %s31 = sphi 0, %s33
    %s34 = sphi 0, %s31
    %s35 = sphi 0, %s34
    %s51 = sphi 0, %s35
    %s55 = sphi 0, %s55
    %s57 = sphi 0, %s55
    %s58 = sphi 0, %s57
    %s72 = sphi 0, %s58
    %s76 = sphi 0, %s76
    %s78 = sphi 0, %s76
    %s79 = sphi 0, %s78
    %s93 = sphi 0, %s79
    %s101 = sphi 0, %s103
    %s104 = sphi 0, %s101
    %s105 = sphi 0, %s104
    %s121 = sphi 0, %s105
  $region4: #{random_cos_forward.1} parent=0 // loop_header_branch
    %12 = sbr.rel (%p10) target = $region8
  $region5: #{random_cos_forward.1} parent=0 // loop_body
    %s14 = ssub.s32 %s9, 1
    %s15 = ssub.s32 %s9, 2
    %s22 = sadd.s32 1, %s17
    %p23 = scmp.ge.s32.totalorder %s22, 1
    %s24 = scalar_select %p23, 0, %s22
    %s25 = sadd.s32 1, %s16
    %s26 = scalar_select %p23, %s25, %s16
    %p27 = scmp.ge.s32.totalorder %s26, 2
    %s28 = scalar_select %p27, 0, %s26
    %s29 = ssub.s32 %s16, %s28
    %p30 = scmp.eq.s32.totalorder %s29, 0
    %s32 = sadd.s32 %s31, 1
    %s33 = scalar_select %p30, %s31, %s32
    %p36 = pneg %p30
    %p37 = scmp.eq.s32.totalorder %s9, 1
    %p38 = por %p36, %p37
    %p39 = scmp.ne.s32.totalorder %s31, %s34
    %p40 = scmp.eq.s32.totalorder %s9, 0
    %p41 = por %p39, %p40
    %p42 = scmp.ne.s32.totalorder %s31, %s34
    %p43 = scmp.eq.s32.totalorder %s14, 1
    %p44 = por %p42, %p43
    %p45 = scmp.ne.s32.totalorder %s34, %s35
    %p46 = scmp.eq.s32.totalorder %s14, 0
    %p47 = por %p45, %p46
    %p48 = scmp.ne.s32.totalorder %s34, %s35
    %p49 = scmp.eq.s32.totalorder %s15, 1
    %p50 = por %p48, %p49
    %p52 = scmp.ne.s32.totalorder %s35, %s51
    %p53 = scmp.eq.s32.totalorder %s15, 0
    %p54 = por %p52, %p53
    %s56 = sadd.s32 %s55, 1
    %p59 = scmp.eq.s32.totalorder %s9, 1
    %p60 = scmp.ne.s32.totalorder %s55, %s57
    %p61 = scmp.eq.s32.totalorder %s9, 0
    %p62 = por %p60, %p61
    %p63 = scmp.ne.s32.totalorder %s55, %s57
    %p64 = scmp.eq.s32.totalorder %s14, 1
    %p65 = por %p63, %p64
    %p66 = scmp.ne.s32.totalorder %s57, %s58
    %p67 = scmp.eq.s32.totalorder %s14, 0
    %p68 = por %p66, %p67
    %p69 = scmp.ne.s32.totalorder %s57, %s58
    %p70 = scmp.eq.s32.totalorder %s15, 1
    %p71 = por %p69, %p70
    %p73 = scmp.ne.s32.totalorder %s58, %s72
    %p74 = scmp.eq.s32.totalorder %s15, 0
    %p75 = por %p73, %p74
    %s77 = sadd.s32 %s76, 1
    %p80 = scmp.eq.s32.totalorder %s9, 1
    %p81 = scmp.ne.s32.totalorder %s76, %s78
    %p82 = scmp.eq.s32.totalorder %s9, 0
    %p83 = por %p81, %p82
    %p84 = scmp.ne.s32.totalorder %s76, %s78
    %p85 = scmp.eq.s32.totalorder %s14, 1
    %p86 = por %p84, %p85
    %p87 = scmp.ne.s32.totalorder %s78, %s79
    %p88 = scmp.eq.s32.totalorder %s14, 0
    %p89 = por %p87, %p88
    %p90 = scmp.ne.s32.totalorder %s78, %s79
    %p91 = scmp.eq.s32.totalorder %s15, 1
    %p92 = por %p90, %p91
    %p94 = scmp.ne.s32.totalorder %s79, %s93
    %p95 = scmp.eq.s32.totalorder %s15, 0
    %p96 = por %p94, %p95
    %s97 = ssub.s32 %s16, %s28
    %s98 = ssub.s32 %s17, %s24
    %s99 = sor.u32 %s97, %s98
    %p100 = scmp.eq.s32.totalorder %s99, 0
    %s102 = sadd.s32 %s101, 1
    %s103 = scalar_select %p100, %s101, %s102
    %p106 = pneg %p100
    %p107 = scmp.eq.s32.totalorder %s9, 1
    %p108 = por %p106, %p107
    %p109 = scmp.ne.s32.totalorder %s101, %s104
    %p110 = scmp.eq.s32.totalorder %s9, 0
    %p111 = por %p109, %p110
    %p112 = scmp.ne.s32.totalorder %s101, %s104
    %p113 = scmp.eq.s32.totalorder %s14, 1
    %p114 = por %p112, %p113
    %p115 = scmp.ne.s32.totalorder %s104, %s105
    %p116 = scmp.eq.s32.totalorder %s14, 0
    %p117 = por %p115, %p116
    %p118 = scmp.ne.s32.totalorder %s104, %s105
    %p119 = scmp.eq.s32.totalorder %s15, 1
    %p120 = por %p118, %p119
    %p122 = scmp.ne.s32.totalorder %s105, %s121
    %p123 = scmp.eq.s32.totalorder %s15, 0
    %p124 = por %p122, %p123
    %p125 = scmp.le.s32.totalorder 1, %s9
    %p126 = scmp.lt.s32.totalorder %s9, 3
    %p127 = pnand %p125, %p126
    %p128 = pneg %p127
    // Predicated region
    $region9: #{random_cos_forward.1} parent=5 // pred_check
      _
    $region10: #{random_cos_forward.1} parent=5 // pred_check_branch
      %130 = sbr.rel (%p127) target = $region12
    $region11: #{random_cos_forward.1} parent=5 // pred_region
      %s131 = ssub.s32 %s9, 1
      // Predicated region
      $region13: #{random_cos_forward.1} parent=11 // pred_check
        %p132 = pneg %p68
      $region14: #{random_cos_forward.1} parent=11 // pred_check_branch
        %134 = sbr.rel (%p132) target = $region16
      $region15: #{random_cos_forward.1} parent=11 // pred_region
        _
      $region16: #{random_cos_forward.1} parent=11 // pred_fallthru
        _
      // Predicated region
      $region17: #{random_cos_forward.1} parent=11 // pred_check
        %p135 = pneg %p89
      $region18: #{random_cos_forward.1} parent=11 // pred_check_branch
        %137 = sbr.rel (%p135) target = $region20
      $region19: #{random_cos_forward.1} parent=11 // pred_region
        _
      $region20: #{random_cos_forward.1} parent=11 // pred_fallthru
        _
    $region12: #{random_cos_forward.1} parent=5 // pred_fallthru
      _
    %p138 = scmp.lt.s32.totalorder %s9, 2
    // Predicated region
    $region21: #{random_cos_forward.1} parent=5 // pred_check
      %p139 = pneg %p138
    $region22: #{random_cos_forward.1} parent=5 // pred_check_branch
      %141 = sbr.rel (%p139) target = $region24
    $region23: #{random_cos_forward.1} parent=5 // pred_region
      // Predicated region
      $region25: #{random_cos_forward.1} parent=23 // pred_check
        %p142 = pneg %p41
      $region26: #{random_cos_forward.1} parent=23 // pred_check_branch
        %144 = sbr.rel (%p142) target = $region28
      $region27: #{random_cos_forward.1} parent=23 // pred_region
        %p145 = scmp.lt.s32.totalorder %s16, 1
        %s146 = scalar_select %p145, %s16, 1
        %s147 = smul.addr %s146, 3
        %s148 = smul.addr %s147, 8
        %s149 = scalar_lea.vmem %s0, %s148
      $region28: #{random_cos_forward.1} parent=23 // pred_fallthru
        _
    $region24: #{random_cos_forward.1} parent=5 // pred_fallthru
      _
    %p150 = scmp.le.s32.totalorder 1, %s9
    %p151 = scmp.lt.s32.totalorder %s9, 3
    %p152 = pnand %p150, %p151
    %p153 = pneg %p152
    // Predicated region
    $region29: #{random_cos_forward.1} parent=5 // pred_check
      _
    $region30: #{random_cos_forward.1} parent=5 // pred_check_branch
      %155 = sbr.rel (%p152) target = $region32
    $region31: #{random_cos_forward.1} parent=5 // pred_region
      %s156 = ssub.s32 %s9, 1
      %p157 = scmp.lt.s32.totalorder %s18, 1
      %s158 = scalar_select %p157, %s18, 1
      %s159 = smul.addr %s158, 3
      %s160 = smul.addr %s159, 8
      %s161 = scalar_lea.vmem %s0, %s160
      %p162 = pneg %p47
      %p163 = pneg %p44
      %p164 = pneg %p68
      %p165 = pneg %p65
      %p166 = pneg %p89
      %p167 = pneg %p86
      %p168 = pneg %p117
      %p169 = pneg %p114
      %s170 = smul.u32 2, %s19
      %p171 = scmp.lt.s32.totalorder %s18, 1
      %s172 = scalar_select %p171, %s18, 1
      %p173 = scmp.lt.s32.totalorder %s170, 1
      %s174 = scalar_select %p173, %s170, 1
      %s175 = smul.addr %s172, 2
      %s176 = sadd.s32 %s174, %s175
      %s177 = smul.addr %s176, 8
      %s178 = scalar_lea.vmem %s3, %s177
      %p179 = scmp.lt.s32.totalorder %s18, 1
      %s180 = scalar_select %p179, %s18, 1
      %s181 = smul.addr %s180, 3
      %s182 = smul.addr %s181, 8
      %s183 = scalar_lea.vmem %s0, %s182
      %s184 = smul.u32 2, %s19
      %p185 = scmp.lt.s32.totalorder %s18, 1
      %s186 = scalar_select %p185, %s18, 1
      %p187 = scmp.lt.s32.totalorder %s184, 1
      %s188 = scalar_select %p187, %s184, 1
      %s189 = smul.addr %s186, 2
      %s190 = sadd.s32 %s188, %s189
      %s191 = smul.addr %s190, 8
      %s192 = scalar_lea.vmem %s3, %s191
      %s193 = smul.u32 2, %s19
      %s194 = smul.u32 %s19, 16
      %s195 = scalar_lea.vmem %s183, %s194
      %v196 = vld [vmem:[%s195] sm:$0xff]
      %v197 = vld [vmem:[%s195 + $0x8] sm:$0xff]
      %v198 = vld [vmem:[%s1] sm:$0xff]
      %v199 = vld [vmem:[%s1 + $0x8] sm:$0xff]
      %v200 = vld [vmem:[%s1 + $0x10] sm:$0xff]
      %v201 = vld [vmem:[%s1 + $0x18] sm:$0xff]
      %v202 = vld [vmem:[%s1 + $0x20] sm:$0xff]
      %v203 = vld [vmem:[%s1 + $0x28] sm:$0xff]
      %v204 = vld [vmem:[%s1 + $0x30] sm:$0xff]
      %v205 = vld [vmem:[%s1 + $0x38] sm:$0xff]
      %v206 = vld [vmem:[%s1 + $0x40] sm:$0xff]
      %s207 = sadd.s32 %s194, 1
      %s208 = scalar_lea.vmem %s183, %s207
      %v209 = vld [vmem:[%s208] sm:$0xff]
      %v210 = vld [vmem:[%s208 + $0x8] sm:$0xff]
      %s211 = scalar_lea.vmem %s1, 72
      %v212 = vld [vmem:[%s211] sm:$0xff]
      %v213 = vld [vmem:[%s211 + $0x8] sm:$0xff]
      %v214 = vld [vmem:[%s211 + $0x10] sm:$0xff]
      %v215 = vld [vmem:[%s211 + $0x18] sm:$0xff]
      %v216 = vld [vmem:[%s211 + $0x20] sm:$0xff]
      %v217 = vld [vmem:[%s211 + $0x28] sm:$0xff]
      %v218 = vld [vmem:[%s211 + $0x30] sm:$0xff]
      %v219 = vld [vmem:[%s211 + $0x38] sm:$0xff]
      %v220 = vld [vmem:[%s211 + $0x40] sm:$0xff]
      %vm221 = vcmask 588800
      %v223 = vsel %vm221, %v209, 0
      %v226 = vsel %vm221, %v210, 0
      %228 = vmatpush.msra.mxu0 0.0
      %229 = vmatpush.msra.mxu0 0.0
      %230 = vmatpush.msra.mxu0 0.0
      %231 = vmatpush.msra.mxu0 0.0
      %232 = vmatpush.msra.mxu0 0.0
      %233 = vmatpush.msra.mxu0 0.0
      %234 = vmatpush.msra.mxu0 0.0
      %235 = vmatpush.msra.mxu0 %v220
      %236 = vmatpush.msra.mxu0 %v219
      %237 = vmatpush.msra.mxu0 %v218
      %238 = vmatpush.msra.mxu0 %v217
      %239 = vmatpush.msra.mxu0 %v216
      %240 = vmatpush.msra.mxu0 %v215
      %241 = vmatpush.msra.mxu0 %v214
      %242 = vmatpush.msra.mxu0 %v213
      %243 = vmatpush.msra.mxu0 %v212
      %244 = vmatmul.f32.gmra.mxu0 %v223
      %v245 = vpop.f32.mrf.mxu0
      %v246 = vadd.f32 0.0, %v245
      %247 = vmatmul.f32.gmra.mxu0 %v226
      %v248 = vpop.f32.mrf.mxu0
      %v249 = vadd.f32 0.0, %v248
      %250 = vdwg.mxu0
      %v252 = vsel %vm221, %v196, 0
      %v255 = vsel %vm221, %v197, 0
      %257 = vmatpush.msra.mxu0 0.0
      %258 = vmatpush.msra.mxu0 0.0
      %259 = vmatpush.msra.mxu0 0.0
      %260 = vmatpush.msra.mxu0 0.0
      %261 = vmatpush.msra.mxu0 0.0
      %262 = vmatpush.msra.mxu0 0.0
      %263 = vmatpush.msra.mxu0 0.0
      %264 = vmatpush.msra.mxu0 %v206
      %265 = vmatpush.msra.mxu0 %v205
      %266 = vmatpush.msra.mxu0 %v204
      %267 = vmatpush.msra.mxu0 %v203
      %268 = vmatpush.msra.mxu0 %v202
      %269 = vmatpush.msra.mxu0 %v201
      %270 = vmatpush.msra.mxu0 %v200
      %271 = vmatpush.msra.mxu0 %v199
      %272 = vmatpush.msra.mxu0 %v198
      %273 = vmatmul.f32.gmra.mxu0 %v252
      %v274 = vpop.f32.mrf.mxu0
      %v275 = vadd.f32 %v246, %v274
      %276 = vmatmul.f32.gmra.mxu0 %v255
      %v277 = vpop.f32.mrf.mxu0
      %v278 = vadd.f32 %v249, %v277
      %279 = vdwg.mxu0
      %s280 = sadd.s32 %s194, 2
      %s281 = scalar_lea.vmem %s183, %s280
      %v282 = vld [vmem:[%s281] sm:$0xff]
      %v283 = vld [vmem:[%s281 + $0x8] sm:$0xff]
      %s284 = scalar_lea.vmem %s1, 144
      %v285 = vld [vmem:[%s284] sm:$0xff]
      %v286 = vld [vmem:[%s284 + $0x8] sm:$0xff]
      %v287 = vld [vmem:[%s284 + $0x10] sm:$0xff]
      %v288 = vld [vmem:[%s284 + $0x18] sm:$0xff]
      %v289 = vld [vmem:[%s284 + $0x20] sm:$0xff]
      %v290 = vld [vmem:[%s284 + $0x28] sm:$0xff]
      %v291 = vld [vmem:[%s284 + $0x30] sm:$0xff]
      %v292 = vld [vmem:[%s284 + $0x38] sm:$0xff]
      %v293 = vld [vmem:[%s284 + $0x40] sm:$0xff]
      %v295 = vsel %vm221, %v282, 0
      %v298 = vsel %vm221, %v283, 0
      %300 = vmatpush.msra.mxu0 0.0
      %301 = vmatpush.msra.mxu0 0.0
      %302 = vmatpush.msra.mxu0 0.0
      %303 = vmatpush.msra.mxu0 0.0
      %304 = vmatpush.msra.mxu0 0.0
      %305 = vmatpush.msra.mxu0 0.0
      %306 = vmatpush.msra.mxu0 0.0
      %307 = vmatpush.msra.mxu0 %v293
      %308 = vmatpush.msra.mxu0 %v292
      %309 = vmatpush.msra.mxu0 %v291
      %310 = vmatpush.msra.mxu0 %v290
      %311 = vmatpush.msra.mxu0 %v289
      %312 = vmatpush.msra.mxu0 %v288
      %313 = vmatpush.msra.mxu0 %v287
      %314 = vmatpush.msra.mxu0 %v286
      %315 = vmatpush.msra.mxu0 %v285
      %316 = vmatmul.f32.gmra.mxu0 %v295
      %v317 = vpop.f32.mrf.mxu0
      %v318 = vadd.f32 0.0, %v317
      %319 = vmatmul.f32.gmra.mxu0 %v298
      %v320 = vpop.f32.mrf.mxu0
      %v321 = vadd.f32 0.0, %v320
      %322 = vdwg.mxu0
      %v323 = vadd.f32 %v275, %v318
      %v324 = vadd.f32 %v278, %v321
      %v325 = vld [vmem:[%s2] sm:$0x1]
      %v327 = vperm.slane %v325, 0
      %v329 = vadd.f32 %v323, %v327
      %v330 = vadd.f32 %v324, %v327
      %v331 = vand.u32 2147483647, %v329
      %vm332 = vcmp.le.f32.partialorder %v331, 0.7853982
      %vm333 = vcmp.lt.s32.totalorder %v329, 0
      %v334 = vand.u32 %v329, 2139095040
      %v335 = vshrl.u32 %v334, 23
      %v336 = vsub.s32 %v335, 127
      %v337 = vand.u32 2147483647, %v329
      %v338 = vand.u32 %v337, 8388607
      %v339 = vor.u32 %v338, 8388608
      %v340 = vsub.s32 0, %v339
      %v341 = vadd.s32 %v336, 1
      %vm342 = vcmp.gt.s32.totalorder %v341, 0
      %v343 = vsel %vm342, %v341, 0
      %v344 = vshrl.u32 %v343, 5
      %v345 = vand.u32 %v343, 31
      %v346 = vsub.s32 32, %v345
      %v347 = vshrl.u32 683565275, %v346
      %v348 = vshll.u32 683565275, %v345
      %v349 = vshrl.u32 2475754826, %v346
      %v350 = vor.u32 %v348, %v349
      %v351 = vshll.u32 2475754826, %v345
      %v352 = vshrl.u32 2131351028, %v346
      %v353 = vor.u32 %v351, %v352
      %v354 = vshll.u32 2131351028, %v345
      %v355 = vshrl.u32 2102212464, %v346
      %v356 = vor.u32 %v354, %v355
      %v357 = vshll.u32 2102212464, %v345
      %v358 = vshrl.u32 920167782, %v346
      %v359 = vor.u32 %v357, %v358
      %v360 = vshll.u32 920167782, %v345
      %v361 = vshrl.u32 1326507024, %v346
      %v362 = vor.u32 %v360, %v361
      %vm363 = vcmp.lt.s32.totalorder %v344, 1
      %vm364 = vcmp.lt.s32.totalorder %v344, 2
      %vm365 = vcmp.lt.s32.totalorder %v344, 3
      %vm366 = vcmp.lt.s32.totalorder %v344, 4
      %v367 = vsel %vm363, %v347, %v350
      %v368 = vsel %vm366, %v356, 2102212464
      %v369 = vsel %vm365, %v353, %v368
      %v370 = vsel %vm364, %v367, %v369
      %v371 = vsel %vm363, %v350, %v353
      %v372 = vsel %vm366, %v359, 920167782
      %v373 = vsel %vm365, %v356, %v372
      %v374 = vsel %vm364, %v371, %v373
      %v375 = vsel %vm363, %v353, %v356
      %v376 = vsel %vm366, %v362, 1326507024
      %v377 = vsel %vm365, %v359, %v376
      %v378 = vsel %vm364, %v375, %v377
      %v379 = vshll.u32 %v339, 8
      %v380 = vand.u32 %v379, 65535
      %v381 = vshrl.u32 %v379, 16
      %v382 = vand.u32 %v378, 65535
      %v383 = vshrl.u32 %v378, 16
      %v384 = vmul.u32 %v380, %v382
      %v385 = vmul.u32 %v380, %v383
      %v386 = vmul.u32 %v381, %v382
      %v387 = vmul.u32 %v381, %v383
      %v388 = vshll.u32 %v385, 16
      %v389 = vshrl.u32 %v385, 16
      %v390 = vshll.u32 %v386, 16
      %v391 = vshrl.u32 %v386, 16
      %vm392 = vc.u32 %v384, %v388
      %v393 = vsel %vm392, 1, 0
      %v394 = vadd.s32 %v384, %v388
      %v395 = vadd.s32 %v387, %v393
      %vm396 = vc.u32 %v394, %v390
      %v397 = vsel %vm396, 1, 0
      %v398 = vadd.s32 %v394, %v390
      %v399 = vadd.s32 %v395, %v397
      %v400 = vadd.s32 %v399, %v389
      %v401 = vadd.s32 %v400, %v391
      %v402 = vand.u32 %v379, 65535
      %v403 = vshrl.u32 %v379, 16
      %v404 = vand.u32 %v374, 65535
      %v405 = vshrl.u32 %v374, 16
      %v406 = vmul.u32 %v402, %v404
      %v407 = vmul.u32 %v402, %v405
      %v408 = vmul.u32 %v403, %v404
      %v409 = vmul.u32 %v403, %v405
      %v410 = vshll.u32 %v407, 16
      %v411 = vshrl.u32 %v407, 16
      %v412 = vshll.u32 %v408, 16
      %v413 = vshrl.u32 %v408, 16
      %vm414 = vc.u32 %v406, %v410
      %v415 = vsel %vm414, 1, 0
      %v416 = vadd.s32 %v406, %v410
      %v417 = vadd.s32 %v409, %v415
      %vm418 = vc.u32 %v416, %v412
      %v419 = vsel %vm418, 1, 0
      %v420 = vadd.s32 %v416, %v412
      %v421 = vadd.s32 %v417, %v419
      %v422 = vadd.s32 %v421, %v411
      %v423 = vadd.s32 %v422, %v413
      %v424 = vmul.u32 %v379, %v370
      %v425 = vadd.s32 %v401, %v420
      %vm426 = vc.u32 %v401, %v420
      %v427 = vadd.s32 %v423, 1
      %v428 = vsel %vm426, %v427, %v423
      %v429 = vadd.s32 %v424, %v428
      %v430 = vadd.s32 %v429, 536870912
      %v431 = vshrl.u32 %v430, 30
      %v432 = vshll.u32 %v431, 30
      %v433 = vsub.s32 %v429, %v432
      %vm434 = vcmp.lt.s32.totalorder %v433, 0
      %v435 = vsub.s32 0, %v433
      %v436 = vsel %vm434, %v435, %v433
      %v437 = vclz %v436
      %v438 = vsub.s32 %v437, 2
      %vm439 = vcmp.gt.s32.totalorder 0, %v438
      %v440 = vsel %vm439, 0, %v438
      %v441 = vsub.s32 32, %v440
      %v442 = vshll.u32 %v433, %v440
      %v443 = vshrl.u32 %v425, %v441
      %v444 = vor.u32 %v442, %v443
      %v445 = vsub.s32 4294967266, %v440
      %v446 = vadd.s32 %v445, 127
      %v447 = vshll.u32 %v446, 23
      %v448 = vor.u32 4788187, %v447
      %v449 = vand.u32 2147483647, %v448
      %v451 = vcvt.s32.f32 %v444
      %v452 = vmul.f32 %v451, %v449
      %v453 = vxor.u32 %v452, 2147483648
      %v454 = vsel %vm333, %v453, %v452
      %v455 = vsub.s32 4, %v431
      %v456 = vsel %vm333, %v455, %v431
      %v457 = vsel %vm332, %v329, %v454
      %v458 = vsel %vm332, 0, %v456
      %v459 = vmul.f32 %v457, %v457
      %v460 = vmul.f32 %v459, -0.001358992
      %v461 = vadd.f32 %v460, 0.041655596
      %v462 = vmul.f32 %v459, %v461
      %v463 = vadd.f32 %v462, -0.4999988
      %v464 = vmul.f32 %v459, %v463
      %v465 = vadd.f32 1.0, %v464
      %v466 = vmul.f32 %v457, %v457
      %v467 = vmul.f32 %v466, -0.00019511016
      %v468 = vadd.f32 %v467, 0.008332121
      %v469 = vmul.f32 %v466, %v468
      %v470 = vadd.f32 %v469, -0.16666654
      %v471 = vmul.f32 %v466, %v470
      %v472 = vadd.f32 %v471, 1.0
      %v473 = vmul.f32 %v472, %v457
      %vm474 = vweird.f32 %v329
      %v475 = vand.u32 %v458, 3
      %vm476 = vcmp.lt.s32.totalorder %v475, 2
      %vm477 = vcmp.eq.s32.totalorder %v475, 0
      %v478 = vxor.u32 %v473, 2147483648
      %v479 = vsel %vm477, %v465, %v478
      %vm480 = vcmp.eq.s32.totalorder %v475, 2
      %v481 = vxor.u32 %v465, 2147483648
      %v482 = vsel %vm480, %v481, %v473
      %v483 = vsel %vm476, %v479, %v482
      %v484 = vsel %vm474, nan, %v483
      %v485 = vand.u32 2147483647, %v330
      %vm486 = vcmp.le.f32.partialorder %v485, 0.7853982
      %vm487 = vcmp.lt.s32.totalorder %v330, 0
      %v488 = vand.u32 %v330, 2139095040
      %v489 = vshrl.u32 %v488, 23
      %v490 = vsub.s32 %v489, 127
      %v491 = vand.u32 2147483647, %v330
      %v492 = vand.u32 %v491, 8388607
      %v493 = vor.u32 %v492, 8388608
      %v494 = vsub.s32 0, %v493
      %v495 = vadd.s32 %v490, 1
      %vm496 = vcmp.gt.s32.totalorder %v495, 0
      %v497 = vsel %vm496, %v495, 0
      %v498 = vshrl.u32 %v497, 5
      %v499 = vand.u32 %v497, 31
      %v500 = vsub.s32 32, %v499
      %v501 = vshrl.u32 683565275, %v500
      %v502 = vshll.u32 683565275, %v499
      %v503 = vshrl.u32 2475754826, %v500
      %v504 = vor.u32 %v502, %v503
      %v505 = vshll.u32 2475754826, %v499
      %v506 = vshrl.u32 2131351028, %v500
      %v507 = vor.u32 %v505, %v506
      %v508 = vshll.u32 2131351028, %v499
      %v509 = vshrl.u32 2102212464, %v500
      %v510 = vor.u32 %v508, %v509
      %v511 = vshll.u32 2102212464, %v499
      %v512 = vshrl.u32 920167782, %v500
      %v513 = vor.u32 %v511, %v512
      %v514 = vshll.u32 920167782, %v499
      %v515 = vshrl.u32 1326507024, %v500
      %v516 = vor.u32 %v514, %v515
      %vm517 = vcmp.lt.s32.totalorder %v498, 1
      %vm518 = vcmp.lt.s32.totalorder %v498, 2
      %vm519 = vcmp.lt.s32.totalorder %v498, 3
      %vm520 = vcmp.lt.s32.totalorder %v498, 4
      %v521 = vsel %vm517, %v501, %v504
      %v522 = vsel %vm520, %v510, 2102212464
      %v523 = vsel %vm519, %v507, %v522
      %v524 = vsel %vm518, %v521, %v523
      %v525 = vsel %vm517, %v504, %v507
      %v526 = vsel %vm520, %v513, 920167782
      %v527 = vsel %vm519, %v510, %v526
      %v528 = vsel %vm518, %v525, %v527
      %v529 = vsel %vm517, %v507, %v510
      %v530 = vsel %vm520, %v516, 1326507024
      %v531 = vsel %vm519, %v513, %v530
      %v532 = vsel %vm518, %v529, %v531
      %v533 = vshll.u32 %v493, 8
      %v534 = vand.u32 %v533, 65535
      %v535 = vshrl.u32 %v533, 16
      %v536 = vand.u32 %v532, 65535
      %v537 = vshrl.u32 %v532, 16
      %v538 = vmul.u32 %v534, %v536
      %v539 = vmul.u32 %v534, %v537
      %v540 = vmul.u32 %v535, %v536
      %v541 = vmul.u32 %v535, %v537
      %v542 = vshll.u32 %v539, 16
      %v543 = vshrl.u32 %v539, 16
      %v544 = vshll.u32 %v540, 16
      %v545 = vshrl.u32 %v540, 16
      %vm546 = vc.u32 %v538, %v542
      %v547 = vsel %vm546, 1, 0
      %v548 = vadd.s32 %v538, %v542
      %v549 = vadd.s32 %v541, %v547
      %vm550 = vc.u32 %v548, %v544
      %v551 = vsel %vm550, 1, 0
      %v552 = vadd.s32 %v548, %v544
      %v553 = vadd.s32 %v549, %v551
      %v554 = vadd.s32 %v553, %v543
      %v555 = vadd.s32 %v554, %v545
      %v556 = vand.u32 %v533, 65535
      %v557 = vshrl.u32 %v533, 16
      %v558 = vand.u32 %v528, 65535
      %v559 = vshrl.u32 %v528, 16
      %v560 = vmul.u32 %v556, %v558
      %v561 = vmul.u32 %v556, %v559
      %v562 = vmul.u32 %v557, %v558
      %v563 = vmul.u32 %v557, %v559
      %v564 = vshll.u32 %v561, 16
      %v565 = vshrl.u32 %v561, 16
      %v566 = vshll.u32 %v562, 16
      %v567 = vshrl.u32 %v562, 16
      %vm568 = vc.u32 %v560, %v564
      %v569 = vsel %vm568, 1, 0
      %v570 = vadd.s32 %v560, %v564
      %v571 = vadd.s32 %v563, %v569
      %vm572 = vc.u32 %v570, %v566
      %v573 = vsel %vm572, 1, 0
      %v574 = vadd.s32 %v570, %v566
      %v575 = vadd.s32 %v571, %v573
      %v576 = vadd.s32 %v575, %v565
      %v577 = vadd.s32 %v576, %v567
      %v578 = vmul.u32 %v533, %v524
      %v579 = vadd.s32 %v555, %v574
      %vm580 = vc.u32 %v555, %v574
      %v581 = vadd.s32 %v577, 1
      %v582 = vsel %vm580, %v581, %v577
      %v583 = vadd.s32 %v578, %v582
      %v584 = vadd.s32 %v583, 536870912
      %v585 = vshrl.u32 %v584, 30
      %v586 = vshll.u32 %v585, 30
      %v587 = vsub.s32 %v583, %v586
      %vm588 = vcmp.lt.s32.totalorder %v587, 0
      %v589 = vsub.s32 0, %v587
      %v590 = vsel %vm588, %v589, %v587
      %v591 = vclz %v590
      %v592 = vsub.s32 %v591, 2
      %vm593 = vcmp.gt.s32.totalorder 0, %v592
      %v594 = vsel %vm593, 0, %v592
      %v595 = vsub.s32 32, %v594
      %v596 = vshll.u32 %v587, %v594
      %v597 = vshrl.u32 %v579, %v595
      %v598 = vor.u32 %v596, %v597
      %v599 = vsub.s32 4294967266, %v594
      %v600 = vadd.s32 %v599, 127
      %v601 = vshll.u32 %v600, 23
      %v602 = vor.u32 4788187, %v601
      %v603 = vand.u32 2147483647, %v602
      %v605 = vcvt.s32.f32 %v598
      %v606 = vmul.f32 %v605, %v603
      %v607 = vxor.u32 %v606, 2147483648
      %v608 = vsel %vm487, %v607, %v606
      %v609 = vsub.s32 4, %v585
      %v610 = vsel %vm487, %v609, %v585
      %v611 = vsel %vm486, %v330, %v608
      %v612 = vsel %vm486, 0, %v610
      %v613 = vmul.f32 %v611, %v611
      %v614 = vmul.f32 %v613, -0.001358992
      %v615 = vadd.f32 %v614, 0.041655596
      %v616 = vmul.f32 %v613, %v615
      %v617 = vadd.f32 %v616, -0.4999988
      %v618 = vmul.f32 %v613, %v617
      %v619 = vadd.f32 1.0, %v618
      %v620 = vmul.f32 %v611, %v611
      %v621 = vmul.f32 %v620, -0.00019511016
      %v622 = vadd.f32 %v621, 0.008332121
      %v623 = vmul.f32 %v620, %v622
      %v624 = vadd.f32 %v623, -0.16666654
      %v625 = vmul.f32 %v620, %v624
      %v626 = vadd.f32 %v625, 1.0
      %v627 = vmul.f32 %v626, %v611
      %vm628 = vweird.f32 %v330
      %v629 = vand.u32 %v612, 3
      %vm630 = vcmp.lt.s32.totalorder %v629, 2
      %vm631 = vcmp.eq.s32.totalorder %v629, 0
      %v632 = vxor.u32 %v627, 2147483648
      %v633 = vsel %vm631, %v619, %v632
      %vm634 = vcmp.eq.s32.totalorder %v629, 2
      %v635 = vxor.u32 %v619, 2147483648
      %v636 = vsel %vm634, %v635, %v627
      %v637 = vsel %vm630, %v633, %v636
      %v638 = vsel %vm628, nan, %v637
      %639 = vst [vmem:[%s192] sm:$0xff] %v484
      %640 = vst [vmem:[%s192 + $0x8] sm:$0xff] %v638
      %s641 = smul.u32 2, %s19
      %p642 = scmp.lt.s32.totalorder %s18, 1
      %s643 = scalar_select %p642, %s18, 1
      %p644 = scmp.lt.s32.totalorder %s641, 1
      %s645 = scalar_select %p644, %s641, 1
      %s646 = smul.addr %s643, 2
      %s647 = sadd.s32 %s645, %s646
      %s648 = smul.addr %s647, 8
      %s649 = scalar_lea.vmem %s3, %s648
      // Predicated region
      $region33: #{random_cos_forward.1} parent=31 // pred_check
        %p650 = pneg %p114
      $region34: #{random_cos_forward.1} parent=31 // pred_check_branch
        %652 = sbr.rel (%p650) target = $region36
      $region35: #{random_cos_forward.1} parent=31 // pred_region
        %s653 = smul.u32 2, %s19
      $region36: #{random_cos_forward.1} parent=31 // pred_fallthru
        _
    $region32: #{random_cos_forward.1} parent=5 // pred_fallthru
      _
    %p654 = scmp.le.s32.totalorder 2, %s9
    // Predicated region
    $region37: #{random_cos_forward.1} parent=5 // pred_check
      %p655 = pneg %p654
    $region38: #{random_cos_forward.1} parent=5 // pred_check_branch
      %657 = sbr.rel (%p655) target = $region40
    $region39: #{random_cos_forward.1} parent=5 // pred_region
      %s658 = ssub.s32 %s9, 2
      // Predicated region
      $region41: #{random_cos_forward.1} parent=39 // pred_check
        %p659 = pneg %p120
      $region42: #{random_cos_forward.1} parent=39 // pred_check_branch
        %661 = sbr.rel (%p659) target = $region44
      $region43: #{random_cos_forward.1} parent=39 // pred_region
        %s662 = smul.u32 2, %s21
        %p663 = scmp.lt.s32.totalorder %s20, 1
        %s664 = scalar_select %p663, %s20, 1
        %p665 = scmp.lt.s32.totalorder %s662, 1
        %s666 = scalar_select %p665, %s662, 1
        %s667 = smul.addr %s664, 2
        %s668 = sadd.s32 %s666, %s667
        %s669 = smul.addr %s668, 8
        %s670 = scalar_lea.vmem %s3, %s669
      $region44: #{random_cos_forward.1} parent=39 // pred_fallthru
        _
    $region40: #{random_cos_forward.1} parent=5 // pred_fallthru
      _
  $region6: #{random_cos_forward.1} parent=0 // loop_footer
    %s13 = sadd.s32 1, %s9
  $region7: #{random_cos_forward.1} parent=0 // loop_footer_branch
    %8 = sbr.rel target = $region3
  $region8: #{random_cos_forward.1} parent=0 // loop_exit
    _

</llo_original>
